<compile_context>
chip_gen: v6e
topology: v6e:2x2x1
jax: 0.10.0
libtpu: 0.0.40
codegen_flags: <defaults>
</compile_context>

<pallas_src>
import math
from functools import partial

import jax
import jax.numpy as jnp
from jax.experimental import pallas as pl
from jax.experimental.pallas import tpu as pltpu

_LANE = 128
_SUBLANE = 8
_NEG_BIG = -1e30


def _round_up(x, m):
    return (x + m - 1) // m * m


def _make_mlp_kernel(n_layers, activation_name, d_out):
    """Fuses all Linear layers + activations + the final (stable) softmax."""

    def kernel(*refs):
        x_ref = refs[0]
        w_refs = refs[1 : 1 + n_layers]
        b_refs = refs[1 + n_layers : 1 + 2 * n_layers]
        o_ref = refs[1 + 2 * n_layers]

        h = x_ref[...]  # (bt, d_in) f32, unpadded input lanes
        for i in range(n_layers):
            # Linear: (bt, n_in[_p]) @ (n_in[_p], n_out_p) + (1, n_out_p)
            z = jnp.dot(h, w_refs[i][...], preferred_element_type=jnp.float32)
            z = z + b_refs[i][...]
            if i == n_layers - 1:
                # Numerically-stable softmax over the lane-dense padded logits.
                # Padded logit columns carry a -1e30 bias -> exp underflows to 0,
                # so the real columns are bit-identical to an unpadded softmax.
                z = z - jnp.max(z, axis=-1, keepdims=True)
                e = jnp.exp(z)
                s = jnp.sum(e, axis=-1, keepdims=True)
                r = pl.reciprocal(s, approx=True)   # EUP slot
                r = r * (2.0 - s * r)               # one Newton step -> ~f32 precision
                h = e * r
            else:
                if activation_name == "relu":
                    h = jnp.maximum(z, 0.0)
                elif activation_name == "sigmoid":
                    h = jax.nn.sigmoid(z)
                elif activation_name == "tanh":
                    h = jnp.tanh(z)
                else:
                    raise ValueError(activation_name)
        # Store only the real output columns (lane-sparse masked store, but saves
        # 12.8x output HBM bytes for d_out=10 in a memory-bound kernel).
        o_ref[...] = h[:, :d_out].astype(o_ref.dtype)

    return kernel


def pad_params(weights, biases):
    """Pad parameters ONCE (at creation/update time), not per forward.

    Layer 0 keeps its natural input width (x is not lane-padded).  Hidden/output
    dims pad to 128 lanes: zero weight rows/cols + zero bias, so padded hidden
    units (which carry activation(0)) feed zero weight rows in the next layer.
    Final-layer padded columns get a -1e30 bias so they vanish in the softmax.
    Returns (weights_padded, biases_padded, d_out).
    """
    n_layers = len(weights)
    d_out = weights[-1].shape[1]
    dims = [weights[0].shape[0]] + [w.shape[1] for w in weights]
    dims_p = [dims[0]] + [_round_up(d, _LANE) for d in dims[1:]]

    w_p, b_p = [], []
    for i, (w, b) in enumerate(zip(weights, biases)):
        n_in, n_out = w.shape
        n_in_p, n_out_p = dims_p[i], dims_p[i + 1]
        wp = jnp.zeros((n_in_p, n_out_p), jnp.float32).at[:n_in, :n_out].set(
            w.astype(jnp.float32)
        )
        fill = _NEG_BIG if i == n_layers - 1 else 0.0
        bp = jnp.full((1, n_out_p), fill, jnp.float32).at[:, :n_out].set(
            b.reshape(1, n_out).astype(jnp.float32)
        )
        w_p.append(wp)
        b_p.append(bp)
    return tuple(w_p), tuple(b_p), d_out


def pt_deep2_forward(x, w_p, b_p, d_out, activation_name, *, batch_tile=1024):
    """Fused MLP forward pass.

    x:    (N, d_in) float32 — NOT padded.
    w_p:  tuple of padded weights from pad_params (layer 0: (d_in, 128), rest (128, 128)).
    b_p:  tuple of padded (1, n_out_p) biases from pad_params.
    """
    n_layers = len(w_p)
    N, d_in = x.shape
    assert w_p[0].shape[0] == d_in

    # Batch tiling: big tiles amortize the ~0.35us/step overhead, but keep the
    # grid at >=2 steps when possible so v7x megacore shards both TensorCores.
    bt = min(batch_tile, max(_SUBLANE, _round_up(-(-N // 2), _SUBLANE)))
    N_p = _round_up(N, bt)
    x_p = x.astype(jnp.float32)
    if N_p != N:
        # Row-only padding; padded rows are all-zero and produce finite, discarded rows.
        x_p = jnp.pad(x_p, ((0, N_p - N), (0, 0)))

    kernel = _make_mlp_kernel(n_layers, activation_name, d_out)

    in_specs = [pl.BlockSpec((bt, d_in), lambda i: (i, 0))]
    for w in w_p:
        in_specs.append(pl.BlockSpec(w.shape, lambda i: (0, 0)))  # resident constants
    for b in b_p:
        in_specs.append(pl.BlockSpec(b.shape, lambda i: (0, 0)))  # resident constants

    # VMEM budget estimate; only pass an explicit limit if we'd exceed the ~32 MiB
    # default scoped VMEM (relevant only if batch_tile is pushed past ~2K rows on v7x).
    est_bytes = 4 * (
        2 * bt * d_in                                   # input double-buffer
        + 2 * bt * d_out                                # output double-buffer
        + 2 * sum(int(w.size) for w in w_p)             # resident (double-buffered) weights
        + 2 * sum(int(b.size) for b in b_p)             # resident (double-buffered) biases
        + 6 * bt * _LANE                                # live f32 temps in the unrolled body
    )
    compiler_kwargs = {}
    if est_bytes > 30 * 1024 * 1024:
        compiler_kwargs["vmem_limit_bytes"] = int(min(2 * est_bytes, 100 * 1024 * 1024))

    y_p = pl.pallas_call(
        kernel,
        out_shape=jax.ShapeDtypeStruct((N_p, d_out), jnp.float32),
        grid=(N_p // bt,),
        in_specs=in_specs,
        out_specs=pl.BlockSpec((bt, d_out), lambda i: (i, 0)),
        compiler_params=pltpu.CompilerParams(
            dimension_semantics=("parallel",), **compiler_kwargs
        ),
    )(x_p, *w_p, *b_p)

    return y_p if N_p == N else y_p[:N]


def init_params(key, neurons_per_layer):
    """Kaiming_uniform-style init matching nn.Linear defaults:
    weight, bias ~ U(-1/sqrt(fan_in), 1/sqrt(fan_in))."""
    weights, biases = [], []
    for i in range(1, len(neurons_per_layer)):
        n_in, n_out = neurons_per_layer[i - 1], neurons_per_layer[i]
        key, wk, bk = jax.random.split(key, 3)
        bound = 1.0 / math.sqrt(n_in)
        w = jax.random.uniform(wk, (n_in, n_out), jnp.float32, -bound, bound)
        b = jax.random.uniform(bk, (1, n_out), jnp.float32, -bound, bound)
        weights.append(w)
        biases.append(b)
    return weights, biases


def reference_forward(x, weights, biases, activation_name):
    """Pure-JAX reference mirroring the PyTorch module."""
    act = {"relu": jax.nn.relu, "sigmoid": jax.nn.sigmoid, "tanh": jnp.tanh}[
        activation_name
    ]
    h = x
    for i, (w, b) in enumerate(zip(weights, biases)):
        z = h @ w + b
        if i == len(weights) - 1:
            h = jax.nn.softmax(z, axis=1)
        else:
            h = act(z)
    return h


if __name__ == "__main__":
    # PTDeep2(neurons_per_layer=[16, 32, 32, 10], activation_name=..., init='kaiming_uniform')
    neurons_per_layer = [16, 32, 32, 10]

    key = jax.random.PRNGKey(0)

    for (N, act_name) in [(16, "relu"), (20, "tanh"), (5, "sigmoid")]:
        key, xk, pk = jax.random.split(key, 3)
        x = jax.random.normal(xk, (N, neurons_per_layer[0]), dtype=jnp.float32)
        weights, biases = init_params(pk, neurons_per_layer)

        # Pad parameters once (out of the per-forward path).
        w_p, b_p, d_out = pad_params(weights, biases)

        fwd = jax.jit(
            lambda x_, w_, b_, a=act_name, d=d_out: pt_deep2_forward(x_, w_, b_, d, a)
        )
        y = jax.block_until_ready(fwd(x, w_p, b_p))
        y_ref = reference_forward(x, weights, biases, act_name)

        assert y.shape == (N, neurons_per_layer[-1])
        assert jnp.allclose(y, y_ref, atol=1e-5, rtol=1e-5), f"mismatch ({act_name})"
        # Softmax rows sum to 1.
        assert jnp.allclose(jnp.sum(y, axis=1), jnp.ones((N,)), atol=1e-5)

    print("KERNEL_OK")
</pallas_src>

<mosaic_0001>
module attributes {stable_mosaic.version = 11 : i64} {
  func.func @kernel(%arg0: i32, %arg1: memref<8x16xf32, #tpu.memory_space<vmem>>, %arg2: memref<16x128xf32, #tpu.memory_space<vmem>>, %arg3: memref<128x128xf32, #tpu.memory_space<vmem>>, %arg4: memref<128x128xf32, #tpu.memory_space<vmem>>, %arg5: memref<1x128xf32, #tpu.memory_space<vmem>>, %arg6: memref<1x128xf32, #tpu.memory_space<vmem>>, %arg7: memref<1x128xf32, #tpu.memory_space<vmem>>, %arg8: memref<8x10xf32, #tpu.memory_space<vmem>>) attributes {dimension_semantics = [#tpu.dimension_semantics<parallel>], iteration_bounds = array<i64: 2>, scalar_prefetch = 0 : i64, scratch_operands = 0 : i64, tpu.core_type = #tpu.core_type<tc>, window_params = [{transform_indices = @transform_0, window_bounds = array<i64: 8, 16>}, {pipeline_mode = #tpu.pipeline_mode<synchronous>, transform_indices = @transform_1, window_bounds = array<i64: 16, 128>}, {pipeline_mode = #tpu.pipeline_mode<synchronous>, transform_indices = @transform_2, window_bounds = array<i64: 128, 128>}, {pipeline_mode = #tpu.pipeline_mode<synchronous>, transform_indices = @transform_3, window_bounds = array<i64: 128, 128>}, {pipeline_mode = #tpu.pipeline_mode<synchronous>, transform_indices = @transform_4, window_bounds = array<i64: 1, 128>}, {pipeline_mode = #tpu.pipeline_mode<synchronous>, transform_indices = @transform_5, window_bounds = array<i64: 1, 128>}, {pipeline_mode = #tpu.pipeline_mode<synchronous>, transform_indices = @transform_6, window_bounds = array<i64: 1, 128>}, {transform_indices = @transform_7, window_bounds = array<i64: 8, 10>}]} {
    %c0 = arith.constant 0 : index
    %c0_0 = arith.constant 0 : index
    %0 = vector.load %arg1[%c0, %c0_0] : memref<8x16xf32, #tpu.memory_space<vmem>>, vector<8x16xf32>
    %c0_1 = arith.constant 0 : index
    %c0_2 = arith.constant 0 : index
    %1 = vector.load %arg2[%c0_1, %c0_2] : memref<16x128xf32, #tpu.memory_space<vmem>>, vector<16x128xf32>
    %cst = arith.constant dense<0.000000e+00> : vector<8x128xf32>
    %2 = tpu.matmul %0, %1, %cst {dimension_numbers = #tpu.dot_dimension_numbers<[1], [0], [0], [1], [0, 0, 1, 1], [], []>} : vector<8x16xf32>, vector<16x128xf32>, vector<8x128xf32> -> vector<8x128xf32>
    %c0_3 = arith.constant 0 : index
    %c0_4 = arith.constant 0 : index
    %3 = vector.load %arg5[%c0_3, %c0_4] : memref<1x128xf32, #tpu.memory_space<vmem>>, vector<1x128xf32>
    %4 = vector.broadcast %3 : vector<1x128xf32> to vector<8x128xf32>
    %5 = arith.addf %2, %4 : vector<8x128xf32>
    %cst_5 = arith.constant 0.000000e+00 : f32
    %6 = vector.broadcast %cst_5 : f32 to vector<8x128xf32>
    %7 = arith.maximumf %5, %6 : vector<8x128xf32>
    %c0_6 = arith.constant 0 : index
    %c0_7 = arith.constant 0 : index
    %8 = vector.load %arg3[%c0_6, %c0_7] : memref<128x128xf32, #tpu.memory_space<vmem>>, vector<128x128xf32>
    %cst_8 = arith.constant dense<0.000000e+00> : vector<8x128xf32>
    %9 = tpu.matmul %7, %8, %cst_8 {dimension_numbers = #tpu.dot_dimension_numbers<[1], [0], [0], [1], [0, 0, 1, 1], [], []>} : vector<8x128xf32>, vector<128x128xf32>, vector<8x128xf32> -> vector<8x128xf32>
    %c0_9 = arith.constant 0 : index
    %c0_10 = arith.constant 0 : index
    %10 = vector.load %arg6[%c0_9, %c0_10] : memref<1x128xf32, #tpu.memory_space<vmem>>, vector<1x128xf32>
    %11 = vector.broadcast %10 : vector<1x128xf32> to vector<8x128xf32>
    %12 = arith.addf %9, %11 : vector<8x128xf32>
    %cst_11 = arith.constant 0.000000e+00 : f32
    %13 = vector.broadcast %cst_11 : f32 to vector<8x128xf32>
    %14 = arith.maximumf %12, %13 : vector<8x128xf32>
    %c0_12 = arith.constant 0 : index
    %c0_13 = arith.constant 0 : index
    %15 = vector.load %arg4[%c0_12, %c0_13] : memref<128x128xf32, #tpu.memory_space<vmem>>, vector<128x128xf32>
    %cst_14 = arith.constant dense<0.000000e+00> : vector<8x128xf32>
    %16 = tpu.matmul %14, %15, %cst_14 {dimension_numbers = #tpu.dot_dimension_numbers<[1], [0], [0], [1], [0, 0, 1, 1], [], []>} : vector<8x128xf32>, vector<128x128xf32>, vector<8x128xf32> -> vector<8x128xf32>
    %c0_15 = arith.constant 0 : index
    %c0_16 = arith.constant 0 : index
    %17 = vector.load %arg7[%c0_15, %c0_16] : memref<1x128xf32, #tpu.memory_space<vmem>>, vector<1x128xf32>
    %18 = vector.broadcast %17 : vector<1x128xf32> to vector<8x128xf32>
    %19 = arith.addf %16, %18 : vector<8x128xf32>
    %cst_17 = arith.constant dense<0xFF800000> : vector<8xf32>
    %20 = vector.multi_reduction <maximumf>, %19, %cst_17 [1] : vector<8x128xf32> to vector<8xf32>
    %21 = vector.shape_cast %20 : vector<8xf32> to vector<8x1xf32>
    %22 = vector.broadcast %21 : vector<8x1xf32> to vector<8x128xf32>
    %23 = arith.subf %19, %22 : vector<8x128xf32>
    %24 = math.exp %23 : vector<8x128xf32>
    %cst_18 = arith.constant dense<0.000000e+00> : vector<8xf32>
    %25 = vector.multi_reduction <add>, %24, %cst_18 [1] : vector<8x128xf32> to vector<8xf32>
    %26 = vector.shape_cast %25 : vector<8xf32> to vector<8x1xf32>
    %27 = tpu.reciprocal %26 {approx = true} : vector<8x1xf32> -> vector<8x1xf32>
    %28 = arith.mulf %26, %27 : vector<8x1xf32>
    %cst_19 = arith.constant 2.000000e+00 : f32
    %29 = vector.broadcast %cst_19 : f32 to vector<8x1xf32>
    %30 = arith.subf %29, %28 : vector<8x1xf32>
    %31 = arith.mulf %27, %30 : vector<8x1xf32>
    %32 = vector.broadcast %31 : vector<8x1xf32> to vector<8x128xf32>
    %33 = arith.mulf %24, %32 : vector<8x128xf32>
    %34 = vector.extract_strided_slice %33 {offsets = [0, 0], sizes = [8, 10], strides = [1, 1]} : vector<8x128xf32> to vector<8x10xf32>
    %c0_20 = arith.constant 0 : index
    %c0_21 = arith.constant 0 : index
    %35 = vector.load %arg8[%c0_20, %c0_21] : memref<8x10xf32, #tpu.memory_space<vmem>>, vector<8x10xf32>
    tpu.vector_store %arg8[%c0_20, %c0_21], %34 {strides = array<i32>} : memref<8x10xf32, #tpu.memory_space<vmem>>, vector<8x10xf32>,
    return
  }
  func.func @transform_0(%arg0: i32) -> (i32, i32) {
    %c0_i32 = arith.constant 0 : i32
    %c0_i32_0 = arith.constant 0 : i32
    return %arg0, %c0_i32 : i32, i32
  }
  func.func @transform_1(%arg0: i32) -> (i32, i32) {
    %c0_i32 = arith.constant 0 : i32
    %c0_i32_0 = arith.constant 0 : i32
    %c0_i32_1 = arith.constant 0 : i32
    return %c0_i32, %c0_i32_0 : i32, i32
  }
  func.func @transform_2(%arg0: i32) -> (i32, i32) {
    %c0_i32 = arith.constant 0 : i32
    %c0_i32_0 = arith.constant 0 : i32
    %c0_i32_1 = arith.constant 0 : i32
    return %c0_i32, %c0_i32_0 : i32, i32
  }
  func.func @transform_3(%arg0: i32) -> (i32, i32) {
    %c0_i32 = arith.constant 0 : i32
    %c0_i32_0 = arith.constant 0 : i32
    %c0_i32_1 = arith.constant 0 : i32
    return %c0_i32, %c0_i32_0 : i32, i32
  }
  func.func @transform_4(%arg0: i32) -> (i32, i32) {
    %c0_i32 = arith.constant 0 : i32
    %c0_i32_0 = arith.constant 0 : i32
    %c0_i32_1 = arith.constant 0 : i32
    return %c0_i32, %c0_i32_0 : i32, i32
  }
  func.func @transform_5(%arg0: i32) -> (i32, i32) {
    %c0_i32 = arith.constant 0 : i32
    %c0_i32_0 = arith.constant 0 : i32
    %c0_i32_1 = arith.constant 0 : i32
    return %c0_i32, %c0_i32_0 : i32, i32
  }
  func.func @transform_6(%arg0: i32) -> (i32, i32) {
    %c0_i32 = arith.constant 0 : i32
    %c0_i32_0 = arith.constant 0 : i32
    %c0_i32_1 = arith.constant 0 : i32
    return %c0_i32, %c0_i32_0 : i32, i32
  }
  func.func @transform_7(%arg0: i32) -> (i32, i32) {
    %c0_i32 = arith.constant 0 : i32
    %c0_i32_0 = arith.constant 0 : i32
    return %arg0, %c0_i32 : i32, i32
  }
}

</mosaic_0001>

<llo_original>
// kernel: _lambda_.1
$region0: #{_lambda_.1}
  #allocation0 [shape = 'u32[]', space=smem, size = 0x4, offset = 0x4, fixed_abs, tag = 'smem constant byte address 0x4 - core index']
  #allocation1 [shape = 'u32[144,128]{1,0:T(1,128)}', space=vmem, size = 0x12000, scoped, tag = 'internal scratch']
  %s0 = inlined_call_operand.hbm [shape: f32[16,16], index: 0, kind: input, shape index: {}]
  %s1 = inlined_call_operand.hbm [shape: f32[16,128], index: 1, kind: input, shape index: {}]
  %s2 = inlined_call_operand.hbm [shape: f32[128,128], index: 2, kind: input, shape index: {}]
  %s3 = inlined_call_operand.hbm [shape: f32[128,128], index: 3, kind: input, shape index: {}]
  %s4 = inlined_call_operand.vmem [shape: f32[1,128], index: 4, kind: input, shape index: {}]
  %s5 = inlined_call_operand.vmem [shape: f32[1,128], index: 5, kind: input, shape index: {}]
  %s6 = inlined_call_operand.vmem [shape: f32[1,128], index: 6, kind: input, shape index: {}]
  %s7 = inlined_call_operand.hbm [shape: f32[16,10], index: 7, kind: output, shape index: {}]
  %s8 = sld [smem:[#allocation0]]
  $region77: #{_lambda_.1} parent=0
    _
  %s10 = ssub.s32 1, %s8
  %s11 = scalar_select 0, %s10, %s8
  $region1: #{_lambda_.1} parent=0
    #allocation2 [shape = 'u8[8192]{0}', space=vmem, size = 0x2000, scoped, tag = 'input window, operand 0']
    #allocation3 [shape = 's32[2]{0}', space=sflag, size = 0x8, scoped, tag = 'scoped memory for _lambda_.1']
    #allocation4 [shape = 's32[2]{0}', space=sflag, size = 0x8, scoped, tag = 'scoped memory for _lambda_.1']
    #allocation5 [shape = 'u8[8192]{0}', space=vmem, size = 0x2000, scoped, tag = 'input window, operand 1, single buffered']
    #allocation6 [shape = 's32[1]{0}', space=sflag, size = 0x4, scoped, tag = 'scoped memory for _lambda_.1']
    #allocation7 [shape = 'u8[65536]{0}', space=vmem, size = 0x10000, scoped, tag = 'input window, operand 2, single buffered']
    #allocation8 [shape = 'u8[65536]{0}', space=vmem, size = 0x10000, scoped, tag = 'input window, operand 3, single buffered']
    #allocation9 [shape = 's32[1]{0}', space=sflag, size = 0x4, scoped, tag = 'scoped memory for _lambda_.1']
    #allocation10 [shape = 'u8[8192]{0}', space=vmem, size = 0x2000, scoped, tag = 'output window, operand 0']
    %12 = vsyncpa [#allocation3], 0
    %s13 = scalar_lea.sflag [#allocation3], 1
    %14 = vsyncpa %s13, 0
    %15 = vsyncpa [#allocation6], 0
    %16 = vsyncpa [#allocation9], 0
    %17 = vsyncpa [#allocation4], 0
    %s18 = scalar_lea.sflag [#allocation4], 1
    %19 = vsyncpa %s18, 0
    loop: start=0, step=1, limit=4
    $region2: #{_lambda_.1} parent=1 // loop_pre_header
      _
    $region3: #{_lambda_.1} parent=1 // loop_header
      %s21 = sphi 0, %s25
      %p22 = scmp.ge.s32.totalorder %s21, 4
      %s31 = sphi 0, %s33
      %s34 = sphi 0, %s31
      %s35 = sphi 0, %s34
      %s51 = sphi 0, %s35
      %s55 = sphi 0, %s55
      %s57 = sphi 0, %s55
      %s58 = sphi 0, %s57
      %s72 = sphi 0, %s58
      %s76 = sphi 0, %s76
      %s78 = sphi 0, %s76
      %s79 = sphi 0, %s78
      %s93 = sphi 0, %s79
      %s97 = sphi 0, %s97
      %s99 = sphi 0, %s97
      %s100 = sphi 0, %s99
      %s114 = sphi 0, %s100
      %s118 = sphi 0, %s118
      %s120 = sphi 0, %s118
      %s121 = sphi 0, %s120
      %s135 = sphi 0, %s121
      %s139 = sphi 0, %s139
      %s141 = sphi 0, %s139
      %s142 = sphi 0, %s141
      %s156 = sphi 0, %s142
      %s160 = sphi 0, %s160
      %s162 = sphi 0, %s160
      %s163 = sphi 0, %s162
      %s177 = sphi 0, %s163
      %s183 = sphi 0, %s185
      %s186 = sphi 0, %s183
      %s187 = sphi 0, %s186
      %s203 = sphi 0, %s187
    $region4: #{_lambda_.1} parent=1 // loop_header_branch
      %24 = sbr.rel (%p22) target = $region8
    $region5: #{_lambda_.1} parent=1 // loop_body
      %s26 = ssub.s32 %s21, 1
      %s27 = ssub.s32 %s21, 2
      %s28 = sadd.s32 %s21, 1
      %s29 = ssub.s32 %s21, %s28
      %p30 = scmp.eq.s32.totalorder %s29, 0
      %s32 = sadd.s32 %s31, 1
      %s33 = scalar_select %p30, %s31, %s32
      %p36 = pneg %p30
      %p37 = scmp.eq.s32.totalorder %s21, 1
      %p38 = por %p36, %p37
      %p39 = scmp.ne.s32.totalorder %s31, %s34
      %p40 = scmp.eq.s32.totalorder %s21, 0
      %p41 = por %p39, %p40
      %p42 = scmp.ne.s32.totalorder %s31, %s34
      %p43 = scmp.eq.s32.totalorder %s26, 1
      %p44 = por %p42, %p43
      %p45 = scmp.ne.s32.totalorder %s34, %s35
      %p46 = scmp.eq.s32.totalorder %s26, 0
      %p47 = por %p45, %p46
      %p48 = scmp.ne.s32.totalorder %s34, %s35
      %p49 = scmp.eq.s32.totalorder %s27, 1
      %p50 = por %p48, %p49
      %p52 = scmp.ne.s32.totalorder %s35, %s51
      %p53 = scmp.eq.s32.totalorder %s27, 0
      %p54 = por %p52, %p53
      %s56 = sadd.s32 %s55, 1
      %p59 = scmp.eq.s32.totalorder %s21, 1
      %p60 = scmp.ne.s32.totalorder %s55, %s57
      %p61 = scmp.eq.s32.totalorder %s21, 0
      %p62 = por %p60, %p61
      %p63 = scmp.ne.s32.totalorder %s55, %s57
      %p64 = scmp.eq.s32.totalorder %s26, 1
      %p65 = por %p63, %p64
      %p66 = scmp.ne.s32.totalorder %s57, %s58
      %p67 = scmp.eq.s32.totalorder %s26, 0
      %p68 = por %p66, %p67
      %p69 = scmp.ne.s32.totalorder %s57, %s58
      %p70 = scmp.eq.s32.totalorder %s27, 1
      %p71 = por %p69, %p70
      %p73 = scmp.ne.s32.totalorder %s58, %s72
      %p74 = scmp.eq.s32.totalorder %s27, 0
      %p75 = por %p73, %p74
      %s77 = sadd.s32 %s76, 1
      %p80 = scmp.eq.s32.totalorder %s21, 1
      %p81 = scmp.ne.s32.totalorder %s76, %s78
      %p82 = scmp.eq.s32.totalorder %s21, 0
      %p83 = por %p81, %p82
      %p84 = scmp.ne.s32.totalorder %s76, %s78
      %p85 = scmp.eq.s32.totalorder %s26, 1
      %p86 = por %p84, %p85
      %p87 = scmp.ne.s32.totalorder %s78, %s79
      %p88 = scmp.eq.s32.totalorder %s26, 0
      %p89 = por %p87, %p88
      %p90 = scmp.ne.s32.totalorder %s78, %s79
      %p91 = scmp.eq.s32.totalorder %s27, 1
      %p92 = por %p90, %p91
      %p94 = scmp.ne.s32.totalorder %s79, %s93
      %p95 = scmp.eq.s32.totalorder %s27, 0
      %p96 = por %p94, %p95
      %s98 = sadd.s32 %s97, 1
      %p101 = scmp.eq.s32.totalorder %s21, 1
      %p102 = scmp.ne.s32.totalorder %s97, %s99
      %p103 = scmp.eq.s32.totalorder %s21, 0
      %p104 = por %p102, %p103
      %p105 = scmp.ne.s32.totalorder %s97, %s99
      %p106 = scmp.eq.s32.totalorder %s26, 1
      %p107 = por %p105, %p106
      %p108 = scmp.ne.s32.totalorder %s99, %s100
      %p109 = scmp.eq.s32.totalorder %s26, 0
      %p110 = por %p108, %p109
      %p111 = scmp.ne.s32.totalorder %s99, %s100
      %p112 = scmp.eq.s32.totalorder %s27, 1
      %p113 = por %p111, %p112
      %p115 = scmp.ne.s32.totalorder %s100, %s114
      %p116 = scmp.eq.s32.totalorder %s27, 0
      %p117 = por %p115, %p116
      %s119 = sadd.s32 %s118, 1
      %p122 = scmp.eq.s32.totalorder %s21, 1
      %p123 = scmp.ne.s32.totalorder %s118, %s120
      %p124 = scmp.eq.s32.totalorder %s21, 0
      %p125 = por %p123, %p124
      %p126 = scmp.ne.s32.totalorder %s118, %s120
      %p127 = scmp.eq.s32.totalorder %s26, 1
      %p128 = por %p126, %p127
      %p129 = scmp.ne.s32.totalorder %s120, %s121
      %p130 = scmp.eq.s32.totalorder %s26, 0
      %p131 = por %p129, %p130
      %p132 = scmp.ne.s32.totalorder %s120, %s121
      %p133 = scmp.eq.s32.totalorder %s27, 1
      %p134 = por %p132, %p133
      %p136 = scmp.ne.s32.totalorder %s121, %s135
      %p137 = scmp.eq.s32.totalorder %s27, 0
      %p138 = por %p136, %p137
      %s140 = sadd.s32 %s139, 1
      %p143 = scmp.eq.s32.totalorder %s21, 1
      %p144 = scmp.ne.s32.totalorder %s139, %s141
      %p145 = scmp.eq.s32.totalorder %s21, 0
      %p146 = por %p144, %p145
      %p147 = scmp.ne.s32.totalorder %s139, %s141
      %p148 = scmp.eq.s32.totalorder %s26, 1
      %p149 = por %p147, %p148
      %p150 = scmp.ne.s32.totalorder %s141, %s142
      %p151 = scmp.eq.s32.totalorder %s26, 0
      %p152 = por %p150, %p151
      %p153 = scmp.ne.s32.totalorder %s141, %s142
      %p154 = scmp.eq.s32.totalorder %s27, 1
      %p155 = por %p153, %p154
      %p157 = scmp.ne.s32.totalorder %s142, %s156
      %p158 = scmp.eq.s32.totalorder %s27, 0
      %p159 = por %p157, %p158
      %s161 = sadd.s32 %s160, 1
      %p164 = scmp.eq.s32.totalorder %s21, 1
      %p165 = scmp.ne.s32.totalorder %s160, %s162
      %p166 = scmp.eq.s32.totalorder %s21, 0
      %p167 = por %p165, %p166
      %p168 = scmp.ne.s32.totalorder %s160, %s162
      %p169 = scmp.eq.s32.totalorder %s26, 1
      %p170 = por %p168, %p169
      %p171 = scmp.ne.s32.totalorder %s162, %s163
      %p172 = scmp.eq.s32.totalorder %s26, 0
      %p173 = por %p171, %p172
      %p174 = scmp.ne.s32.totalorder %s162, %s163
      %p175 = scmp.eq.s32.totalorder %s27, 1
      %p176 = por %p174, %p175
      %p178 = scmp.ne.s32.totalorder %s163, %s177
      %p179 = scmp.eq.s32.totalorder %s27, 0
      %p180 = por %p178, %p179
      %s181 = ssub.s32 %s21, %s28
      %p182 = scmp.eq.s32.totalorder %s181, 0
      %s184 = sadd.s32 %s183, 1
      %s185 = scalar_select %p182, %s183, %s184
      %p188 = pneg %p182
      %p189 = scmp.eq.s32.totalorder %s21, 1
      %p190 = por %p188, %p189
      %p191 = scmp.ne.s32.totalorder %s183, %s186
      %p192 = scmp.eq.s32.totalorder %s21, 0
      %p193 = por %p191, %p192
      %p194 = scmp.ne.s32.totalorder %s183, %s186
      %p195 = scmp.eq.s32.totalorder %s26, 1
      %p196 = por %p194, %p195
      %p197 = scmp.ne.s32.totalorder %s186, %s187
      %p198 = scmp.eq.s32.totalorder %s26, 0
      %p199 = por %p197, %p198
      %p200 = scmp.ne.s32.totalorder %s186, %s187
      %p201 = scmp.eq.s32.totalorder %s27, 1
      %p202 = por %p200, %p201
      %p204 = scmp.ne.s32.totalorder %s187, %s203
      %p205 = scmp.eq.s32.totalorder %s27, 0
      %p206 = por %p204, %p205
      %p207 = scmp.le.s32.totalorder 1, %s21
      %p208 = scmp.lt.s32.totalorder %s21, 3
      %p209 = pnand %p207, %p208
      %p210 = pneg %p209
      // Predicated region
      $region9: #{_lambda_.1} parent=5 // pred_check
        _
      $region10: #{_lambda_.1} parent=5 // pred_check_branch
        %212 = sbr.rel (%p209) target = $region12
      $region11: #{_lambda_.1} parent=5 // pred_region
        %s213 = ssub.s32 %s21, 1
        // Predicated region
        $region13: #{_lambda_.1} parent=11 // pred_check
          %p214 = pneg %p68
        $region14: #{_lambda_.1} parent=11 // pred_check_branch
          %216 = sbr.rel (%p214) target = $region16
        $region15: #{_lambda_.1} parent=11 // pred_region
          %s218 = ssub.s32 256, 256
          %219 = vsyncadd [#allocation6], %s218
          %s220 = sshll.u32 [#allocation5], 4
          %s221 = int_to_ptr.vmem [resolvable:$true] %s220
          %226 = dma.hbm_to_vmem [thread:$0]  %s1, 256, %s221, [#allocation6], 128, 128, 8
        $region16: #{_lambda_.1} parent=11 // pred_fallthru
          _
        // Predicated region
        $region17: #{_lambda_.1} parent=11 // pred_check
          %p227 = pneg %p89
        $region18: #{_lambda_.1} parent=11 // pred_check_branch
          %229 = sbr.rel (%p227) target = $region20
        $region19: #{_lambda_.1} parent=11 // pred_region
          %s231 = ssub.s32 2048, 2048
          %232 = vsyncadd [#allocation6], %s231
          %s233 = sshll.u32 [#allocation7], 4
          %s234 = int_to_ptr.vmem [resolvable:$true] %s233
          %239 = dma.hbm_to_vmem [thread:$0]  %s2, 2048, %s234, [#allocation6], 128, 128, 8
        $region20: #{_lambda_.1} parent=11 // pred_fallthru
          _
        // Predicated region
        $region21: #{_lambda_.1} parent=11 // pred_check
          %p240 = pneg %p110
        $region22: #{_lambda_.1} parent=11 // pred_check_branch
          %242 = sbr.rel (%p240) target = $region24
        $region23: #{_lambda_.1} parent=11 // pred_region
          %s244 = ssub.s32 2048, 2048
          %245 = vsyncadd [#allocation9], %s244
          %s246 = sshll.u32 [#allocation8], 4
          %s247 = int_to_ptr.vmem [resolvable:$true] %s246
          %252 = dma.hbm_to_vmem [thread:$0]  %s3, 2048, %s247, [#allocation9], 128, 128, 8
        $region24: #{_lambda_.1} parent=11 // pred_fallthru
          _
        // Predicated region
        $region25: #{_lambda_.1} parent=11 // pred_check
          %p253 = pneg %p131
        $region26: #{_lambda_.1} parent=11 // pred_check_branch
          %255 = sbr.rel (%p253) target = $region28
        $region27: #{_lambda_.1} parent=11 // pred_region
          _
        $region28: #{_lambda_.1} parent=11 // pred_fallthru
          _
        // Predicated region
        $region29: #{_lambda_.1} parent=11 // pred_check
          %p256 = pneg %p152
        $region30: #{_lambda_.1} parent=11 // pred_check_branch
          %258 = sbr.rel (%p256) target = $region32
        $region31: #{_lambda_.1} parent=11 // pred_region
          _
        $region32: #{_lambda_.1} parent=11 // pred_fallthru
          _
        // Predicated region
        $region33: #{_lambda_.1} parent=11 // pred_check
          %p259 = pneg %p173
        $region34: #{_lambda_.1} parent=11 // pred_check_branch
          %261 = sbr.rel (%p259) target = $region36
        $region35: #{_lambda_.1} parent=11 // pred_region
          _
        $region36: #{_lambda_.1} parent=11 // pred_fallthru
          _
      $region12: #{_lambda_.1} parent=5 // pred_fallthru
        _
      %p262 = scmp.lt.s32.totalorder %s21, 2
      // Predicated region
      $region37: #{_lambda_.1} parent=5 // pred_check
        %p263 = pneg %p262
      $region38: #{_lambda_.1} parent=5 // pred_check_branch
        %265 = sbr.rel (%p263) target = $region40
      $region39: #{_lambda_.1} parent=5 // pred_region
        // Predicated region
        $region41: #{_lambda_.1} parent=39 // pred_check
          %p266 = pneg %p41
        $region42: #{_lambda_.1} parent=39 // pred_check_branch
          %268 = sbr.rel (%p266) target = $region44
        $region43: #{_lambda_.1} parent=39 // pred_region
          %s269 = sand.u32 %s31, 1
          %s270 = scalar_lea.sflag [#allocation3], %s269
          %s271 = sand.u32 %s31, 1
          %s272 = smul.addr %s271, 8
          %s273 = scalar_lea.vmem [#allocation2], %s272
          %s275 = ssub.s32 128, 128
          %276 = vsyncadd %s270, %s275
          %s277 = smul.addr %s21, 128
          %s278 = scalar_lea.hbm %s0, %s277
          %s280 = sshll.u32 %s273, 4
          %s281 = int_to_ptr.vmem [resolvable:$true] %s280
          %283 = dma.hbm_to_vmem [thread:$0]  %s278, 128, %s281, %s270
        $region44: #{_lambda_.1} parent=39 // pred_fallthru
          _
      $region40: #{_lambda_.1} parent=5 // pred_fallthru
        _
      %p284 = scmp.le.s32.totalorder 1, %s21
      %p285 = scmp.lt.s32.totalorder %s21, 3
      %p286 = pnand %p284, %p285
      %p287 = pneg %p286
      // Predicated region
      $region45: #{_lambda_.1} parent=5 // pred_check
        _
      $region46: #{_lambda_.1} parent=5 // pred_check_branch
        %289 = sbr.rel (%p286) target = $region48
      $region47: #{_lambda_.1} parent=5 // pred_region
        %s290 = ssub.s32 %s21, 1
        %s291 = sand.u32 %s34, 1
        %s292 = scalar_lea.sflag [#allocation3], %s291
        %s293 = sand.u32 %s34, 1
        %s294 = smul.addr %s293, 8
        %s295 = scalar_lea.vmem [#allocation2], %s294
        // Predicated region
        $region49: #{_lambda_.1} parent=47 // pred_check
          %p296 = pneg %p47
        $region50: #{_lambda_.1} parent=47 // pred_check_branch
          %298 = sbr.rel (%p296) target = $region52
        $region51: #{_lambda_.1} parent=47 // pred_region
          %299 = dma.done %s292, 128
        $region52: #{_lambda_.1} parent=47 // pred_fallthru
          _
        // Predicated region
        $region53: #{_lambda_.1} parent=47 // pred_check
          %p300 = pneg %p68
        $region54: #{_lambda_.1} parent=47 // pred_check_branch
          %302 = sbr.rel (%p300) target = $region56
        $region55: #{_lambda_.1} parent=47 // pred_region
          %303 = dma.done [#allocation6], 256
        $region56: #{_lambda_.1} parent=47 // pred_fallthru
          _
        // Predicated region
        $region57: #{_lambda_.1} parent=47 // pred_check
          %p304 = pneg %p89
        $region58: #{_lambda_.1} parent=47 // pred_check_branch
          %306 = sbr.rel (%p304) target = $region60
        $region59: #{_lambda_.1} parent=47 // pred_region
          %307 = dma.done [#allocation6], 2048
        $region60: #{_lambda_.1} parent=47 // pred_fallthru
          _
        // Predicated region
        $region61: #{_lambda_.1} parent=47 // pred_check
          %p308 = pneg %p110
        $region62: #{_lambda_.1} parent=47 // pred_check_branch
          %310 = sbr.rel (%p308) target = $region64
        $region63: #{_lambda_.1} parent=47 // pred_region
          %311 = dma.done [#allocation9], 2048
        $region64: #{_lambda_.1} parent=47 // pred_fallthru
          _
        %s312 = sand.u32 %s34, 1
        %s313 = scalar_lea.sflag [#allocation3], %s312
        %s314 = sand.u32 %s34, 1
        %s315 = smul.addr %s314, 8
        %s316 = scalar_lea.vmem [#allocation2], %s315
        %p317 = pneg %p47
        %p318 = pneg %p44
        %p319 = pneg %p68
        %p320 = pneg %p65
        %p321 = pneg %p89
        %p322 = pneg %p86
        %p323 = pneg %p110
        %p324 = pneg %p107
        %p325 = pneg %p131
        %p326 = pneg %p128
        %p327 = pneg %p152
        %p328 = pneg %p149
        %p329 = pneg %p173
        %p330 = pneg %p170
        %p331 = pneg %p199
        %p332 = pneg %p196
        %s333 = sand.u32 %s186, 1
        %s334 = scalar_lea.sflag [#allocation4], %s333
        %s335 = sand.u32 %s186, 1
        %s336 = smul.addr %s335, 8
        %s337 = scalar_lea.vmem [#allocation10], %s336
        %v338 = vld [vmem:[%s295] sm:$0xff]
        %v339 = vld [vmem:[#allocation5] sm:$0xff]
        %v340 = vld [vmem:[#allocation5 + $0x8] sm:$0xff]
        %v341 = vld [vmem:[%s4] sm:$0x1]
        %v343 = vlaneseq
        %v344 = vshrl.u32 %v343, 7
        %v345 = vsub.s32 0, %v344
        %v346 = vrot.slane %v341, %v345
        %vm348 = vcmask 130048
        %v350 = vsel %vm348, %v338, 0
        %352 = vmatprep.subr.mxu0 0.0
        %353 = vmatpush1.msra.mxu0 0.0
        %354 = vmatprep.subr.mxu0 0.0
        %355 = vmatpush1.msra.mxu0 0.0
        %356 = vmatprep.subr.mxu0 0.0
        %357 = vmatpush1.msra.mxu0 0.0
        %358 = vmatprep.subr.mxu0 0.0
        %359 = vmatpush1.msra.mxu0 0.0
        %360 = vmatprep.subr.mxu0 0.0
        %361 = vmatpush1.msra.mxu0 0.0
        %362 = vmatprep.subr.mxu0 0.0
        %363 = vmatpush1.msra.mxu0 0.0
        %364 = vmatprep.subr.mxu0 0.0
        %365 = vmatpush1.msra.mxu0 0.0
        %366 = vmatprep.subr.mxu0 0.0
        %367 = vmatpush1.msra.mxu0 0.0
        %368 = vmatprep.subr.mxu0 0.0
        %369 = vmatpush1.msra.mxu0 0.0
        %370 = vmatprep.subr.mxu0 0.0
        %371 = vmatpush1.msra.mxu0 0.0
        %372 = vmatprep.subr.mxu0 0.0
        %373 = vmatpush1.msra.mxu0 0.0
        %374 = vmatprep.subr.mxu0 0.0
        %375 = vmatpush1.msra.mxu0 0.0
        %376 = vmatprep.subr.mxu0 0.0
        %377 = vmatpush1.msra.mxu0 0.0
        %378 = vmatprep.subr.mxu0 0.0
        %379 = vmatpush1.msra.mxu0 0.0
        %380 = vmatprep.subr.mxu0 0.0
        %381 = vmatpush1.msra.mxu0 %v340
        %382 = vmatprep.subr.mxu0 0.0
        %383 = vmatpush1.msra.mxu0 %v339
        %384 = vmatprep.subr.mxu0 0.0
        %385 = vmatpush2.msra.mxu0 0.0
        %386 = vmatprep.subr.mxu0 0.0
        %387 = vmatpush2.msra.mxu0 0.0
        %388 = vmatprep.subr.mxu0 0.0
        %389 = vmatpush2.msra.mxu0 0.0
        %390 = vmatprep.subr.mxu0 0.0
        %391 = vmatpush2.msra.mxu0 0.0
        %392 = vmatprep.subr.mxu0 0.0
        %393 = vmatpush2.msra.mxu0 0.0
        %394 = vmatprep.subr.mxu0 0.0
        %395 = vmatpush2.msra.mxu0 0.0
        %396 = vmatprep.subr.mxu0 0.0
        %397 = vmatpush2.msra.mxu0 0.0
        %398 = vmatprep.subr.mxu0 0.0
        %399 = vmatpush2.msra.mxu0 0.0
        %400 = vmatprep.subr.mxu0 0.0
        %401 = vmatpush2.msra.mxu0 0.0
        %402 = vmatprep.subr.mxu0 0.0
        %403 = vmatpush2.msra.mxu0 0.0
        %404 = vmatprep.subr.mxu0 0.0
        %405 = vmatpush2.msra.mxu0 0.0
        %406 = vmatprep.subr.mxu0 0.0
        %407 = vmatpush2.msra.mxu0 0.0
        %408 = vmatprep.subr.mxu0 0.0
        %409 = vmatpush2.msra.mxu0 0.0
        %410 = vmatprep.subr.mxu0 0.0
        %411 = vmatpush2.msra.mxu0 0.0
        %412 = vmatprep.subr.mxu0 0.0
        %413 = vmatpush2.msra.mxu0 0.0
        %414 = vmatprep.subr.mxu0 0.0
        %415 = vmatpush2.msra.mxu0 0.0
        %416 = vmatprep.mubr.f32.mxu0 0.0
        %417 = vmatmul.mubr.f32.gmra.mxu0 %v350
        %v418 = vpop.f32.mrf.mxu0
        %v419 = vadd.f32 %v346, %v418
        %v420 = vpop.f32.mrf.mxu0
        %421 = vdwg.mxu0
        %v422 = vmax.f32 %v419, 0.0
        %v423 = vld [vmem:[#allocation7] sm:$0xff]
        %v424 = vld [vmem:[#allocation7 + $0x8] sm:$0xff]
        %v425 = vld [vmem:[#allocation7 + $0x10] sm:$0xff]
        %v426 = vld [vmem:[#allocation7 + $0x18] sm:$0xff]
        %v427 = vld [vmem:[#allocation7 + $0x20] sm:$0xff]
        %v428 = vld [vmem:[#allocation7 + $0x28] sm:$0xff]
        %v429 = vld [vmem:[#allocation7 + $0x30] sm:$0xff]
        %v430 = vld [vmem:[#allocation7 + $0x38] sm:$0xff]
        %v431 = vld [vmem:[#allocation7 + $0x40] sm:$0xff]
        %v432 = vld [vmem:[#allocation7 + $0x48] sm:$0xff]
        %v433 = vld [vmem:[#allocation7 + $0x50] sm:$0xff]
        %v434 = vld [vmem:[#allocation7 + $0x58] sm:$0xff]
        %v435 = vld [vmem:[#allocation7 + $0x60] sm:$0xff]
        %v436 = vld [vmem:[#allocation7 + $0x68] sm:$0xff]
        %v437 = vld [vmem:[#allocation7 + $0x70] sm:$0xff]
        %v438 = vld [vmem:[#allocation7 + $0x78] sm:$0xff]
        %v439 = vld [vmem:[%s5] sm:$0x1]
        %v441 = vlaneseq
        %v442 = vshrl.u32 %v441, 7
        %v443 = vsub.s32 0, %v442
        %v444 = vrot.slane %v439, %v443
        %446 = vmatprep.subr.mxu0 0.0
        %447 = vmatpush1.msra.mxu0 %v438
        %448 = vmatprep.subr.mxu0 0.0
        %449 = vmatpush1.msra.mxu0 %v437
        %450 = vmatprep.subr.mxu0 0.0
        %451 = vmatpush1.msra.mxu0 %v436
        %452 = vmatprep.subr.mxu0 0.0
        %453 = vmatpush1.msra.mxu0 %v435
        %454 = vmatprep.subr.mxu0 0.0
        %455 = vmatpush1.msra.mxu0 %v434
        %456 = vmatprep.subr.mxu0 0.0
        %457 = vmatpush1.msra.mxu0 %v433
        %458 = vmatprep.subr.mxu0 0.0
        %459 = vmatpush1.msra.mxu0 %v432
        %460 = vmatprep.subr.mxu0 0.0
        %461 = vmatpush1.msra.mxu0 %v431
        %462 = vmatprep.subr.mxu0 0.0
        %463 = vmatpush1.msra.mxu0 %v430
        %464 = vmatprep.subr.mxu0 0.0
        %465 = vmatpush1.msra.mxu0 %v429
        %466 = vmatprep.subr.mxu0 0.0
        %467 = vmatpush1.msra.mxu0 %v428
        %468 = vmatprep.subr.mxu0 0.0
        %469 = vmatpush1.msra.mxu0 %v427
        %470 = vmatprep.subr.mxu0 0.0
        %471 = vmatpush1.msra.mxu0 %v426
        %472 = vmatprep.subr.mxu0 0.0
        %473 = vmatpush1.msra.mxu0 %v425
        %474 = vmatprep.subr.mxu0 0.0
        %475 = vmatpush1.msra.mxu0 %v424
        %476 = vmatprep.subr.mxu0 0.0
        %477 = vmatpush1.msra.mxu0 %v423
        %478 = vmatprep.subr.mxu0 0.0
        %479 = vmatpush2.msra.mxu0 0.0
        %480 = vmatprep.subr.mxu0 0.0
        %481 = vmatpush2.msra.mxu0 0.0
        %482 = vmatprep.subr.mxu0 0.0
        %483 = vmatpush2.msra.mxu0 0.0
        %484 = vmatprep.subr.mxu0 0.0
        %485 = vmatpush2.msra.mxu0 0.0
        %486 = vmatprep.subr.mxu0 0.0
        %487 = vmatpush2.msra.mxu0 0.0
        %488 = vmatprep.subr.mxu0 0.0
        %489 = vmatpush2.msra.mxu0 0.0
        %490 = vmatprep.subr.mxu0 0.0
        %491 = vmatpush2.msra.mxu0 0.0
        %492 = vmatprep.subr.mxu0 0.0
        %493 = vmatpush2.msra.mxu0 0.0
        %494 = vmatprep.subr.mxu0 0.0
        %495 = vmatpush2.msra.mxu0 0.0
        %496 = vmatprep.subr.mxu0 0.0
        %497 = vmatpush2.msra.mxu0 0.0
        %498 = vmatprep.subr.mxu0 0.0
        %499 = vmatpush2.msra.mxu0 0.0
        %500 = vmatprep.subr.mxu0 0.0
        %501 = vmatpush2.msra.mxu0 0.0
        %502 = vmatprep.subr.mxu0 0.0
        %503 = vmatpush2.msra.mxu0 0.0
        %504 = vmatprep.subr.mxu0 0.0
        %505 = vmatpush2.msra.mxu0 0.0
        %506 = vmatprep.subr.mxu0 0.0
        %507 = vmatpush2.msra.mxu0 0.0
        %508 = vmatprep.subr.mxu0 0.0
        %509 = vmatpush2.msra.mxu0 0.0
        %510 = vmatprep.mubr.f32.mxu0 0.0
        %511 = vmatmul.mubr.f32.gmra.mxu0 %v422
        %v512 = vpop.f32.mrf.mxu0
        %v513 = vadd.f32 %v444, %v512
        %v514 = vpop.f32.mrf.mxu0
        %515 = vdwg.mxu0
        %v516 = vmax.f32 %v513, 0.0
        %v517 = vld [vmem:[#allocation8] sm:$0xff]
        %v518 = vld [vmem:[#allocation8 + $0x8] sm:$0xff]
        %v519 = vld [vmem:[#allocation8 + $0x10] sm:$0xff]
        %v520 = vld [vmem:[#allocation8 + $0x18] sm:$0xff]
        %v521 = vld [vmem:[#allocation8 + $0x20] sm:$0xff]
        %v522 = vld [vmem:[#allocation8 + $0x28] sm:$0xff]
        %v523 = vld [vmem:[#allocation8 + $0x30] sm:$0xff]
        %v524 = vld [vmem:[#allocation8 + $0x38] sm:$0xff]
        %v525 = vld [vmem:[#allocation8 + $0x40] sm:$0xff]
        %v526 = vld [vmem:[#allocation8 + $0x48] sm:$0xff]
        %v527 = vld [vmem:[#allocation8 + $0x50] sm:$0xff]
        %v528 = vld [vmem:[#allocation8 + $0x58] sm:$0xff]
        %v529 = vld [vmem:[#allocation8 + $0x60] sm:$0xff]
        %v530 = vld [vmem:[#allocation8 + $0x68] sm:$0xff]
        %v531 = vld [vmem:[#allocation8 + $0x70] sm:$0xff]
        %v532 = vld [vmem:[#allocation8 + $0x78] sm:$0xff]
        %v533 = vld [vmem:[%s6] sm:$0x1]
        %v535 = vlaneseq
        %v536 = vshrl.u32 %v535, 7
        %v537 = vsub.s32 0, %v536
        %v538 = vrot.slane %v533, %v537
        %540 = vmatprep.subr.mxu0 0.0
        %541 = vmatpush1.msra.mxu0 %v532
        %542 = vmatprep.subr.mxu0 0.0
        %543 = vmatpush1.msra.mxu0 %v531
        %544 = vmatprep.subr.mxu0 0.0
        %545 = vmatpush1.msra.mxu0 %v530
        %546 = vmatprep.subr.mxu0 0.0
        %547 = vmatpush1.msra.mxu0 %v529
        %548 = vmatprep.subr.mxu0 0.0
        %549 = vmatpush1.msra.mxu0 %v528
        %550 = vmatprep.subr.mxu0 0.0
        %551 = vmatpush1.msra.mxu0 %v527
        %552 = vmatprep.subr.mxu0 0.0
        %553 = vmatpush1.msra.mxu0 %v526
        %554 = vmatprep.subr.mxu0 0.0
        %555 = vmatpush1.msra.mxu0 %v525
        %556 = vmatprep.subr.mxu0 0.0
        %557 = vmatpush1.msra.mxu0 %v524
        %558 = vmatprep.subr.mxu0 0.0
        %559 = vmatpush1.msra.mxu0 %v523
        %560 = vmatprep.subr.mxu0 0.0
        %561 = vmatpush1.msra.mxu0 %v522
        %562 = vmatprep.subr.mxu0 0.0
        %563 = vmatpush1.msra.mxu0 %v521
        %564 = vmatprep.subr.mxu0 0.0
        %565 = vmatpush1.msra.mxu0 %v520
        %566 = vmatprep.subr.mxu0 0.0
        %567 = vmatpush1.msra.mxu0 %v519
        %568 = vmatprep.subr.mxu0 0.0
        %569 = vmatpush1.msra.mxu0 %v518
        %570 = vmatprep.subr.mxu0 0.0
        %571 = vmatpush1.msra.mxu0 %v517
        %572 = vmatprep.subr.mxu0 0.0
        %573 = vmatpush2.msra.mxu0 0.0
        %574 = vmatprep.subr.mxu0 0.0
        %575 = vmatpush2.msra.mxu0 0.0
        %576 = vmatprep.subr.mxu0 0.0
        %577 = vmatpush2.msra.mxu0 0.0
        %578 = vmatprep.subr.mxu0 0.0
        %579 = vmatpush2.msra.mxu0 0.0
        %580 = vmatprep.subr.mxu0 0.0
        %581 = vmatpush2.msra.mxu0 0.0
        %582 = vmatprep.subr.mxu0 0.0
        %583 = vmatpush2.msra.mxu0 0.0
        %584 = vmatprep.subr.mxu0 0.0
        %585 = vmatpush2.msra.mxu0 0.0
        %586 = vmatprep.subr.mxu0 0.0
        %587 = vmatpush2.msra.mxu0 0.0
        %588 = vmatprep.subr.mxu0 0.0
        %589 = vmatpush2.msra.mxu0 0.0
        %590 = vmatprep.subr.mxu0 0.0
        %591 = vmatpush2.msra.mxu0 0.0
        %592 = vmatprep.subr.mxu0 0.0
        %593 = vmatpush2.msra.mxu0 0.0
        %594 = vmatprep.subr.mxu0 0.0
        %595 = vmatpush2.msra.mxu0 0.0
        %596 = vmatprep.subr.mxu0 0.0
        %597 = vmatpush2.msra.mxu0 0.0
        %598 = vmatprep.subr.mxu0 0.0
        %599 = vmatpush2.msra.mxu0 0.0
        %600 = vmatprep.subr.mxu0 0.0
        %601 = vmatpush2.msra.mxu0 0.0
        %602 = vmatprep.subr.mxu0 0.0
        %603 = vmatpush2.msra.mxu0 0.0
        %604 = vmatprep.mubr.f32.mxu0 0.0
        %605 = vmatmul.mubr.f32.gmra.mxu0 %v516
        %v606 = vpop.f32.mrf.mxu0
        %v607 = vadd.f32 %v538, %v606
        %v608 = vpop.f32.mrf.mxu0
        %609 = vdwg.mxu0
        %610 = vmax.xlane.f32.xlu0 %v607
        %v611 = vpop.xlane.xlu0 %610
        %v612 = vsub.f32 %v607, %v611
        %v613 = vmul.f32 %v612, 1.442695
        %v614 = vpow.pop %v613
        %615 = vadd.xlane.f32.xlu0 %v614
        %v616 = vpop.xlane.xlu0 %615
        %v617 = vrcp.pop %v616
        %v618 = vmul.f32 %v616, %v617
        %v619 = vsub.f32 2.0, %v618
        %v620 = vmul.f32 %v617, %v619
        %v621 = vmul.f32 %v614, %v620
        %vm622 = vcmask 80896
        %623 = vst.msk [vmem:[%s337] sm:$0xff] %vm622, %v621
        %s624 = sand.u32 %s186, 1
        %s625 = scalar_lea.sflag [#allocation4], %s624
        %s626 = sand.u32 %s186, 1
        %s627 = smul.addr %s626, 8
        %s628 = scalar_lea.vmem [#allocation10], %s627
        // Predicated region
        $region65: #{_lambda_.1} parent=47 // pred_check
          %p629 = pneg %p196
        $region66: #{_lambda_.1} parent=47 // pred_check_branch
          %631 = sbr.rel (%p629) target = $region68
        $region67: #{_lambda_.1} parent=47 // pred_region
          %s633 = ssub.s32 128, 128
          %634 = vsyncadd %s625, %s633
          %s635 = smul.addr %s26, 128
          %s636 = scalar_lea.hbm %s7, %s635
          %s638 = sshll.u32 %s628, 4
          %s639 = int_to_ptr.vmem [resolvable:$true] %s638
          %641 = dma.vmem_to_hbm [thread:$0]  %s639, 128, %s636, %s625
        $region68: #{_lambda_.1} parent=47 // pred_fallthru
          _
      $region48: #{_lambda_.1} parent=5 // pred_fallthru
        _
      %p642 = scmp.le.s32.totalorder 2, %s21
      // Predicated region
      $region69: #{_lambda_.1} parent=5 // pred_check
        %p643 = pneg %p642
      $region70: #{_lambda_.1} parent=5 // pred_check_branch
        %645 = sbr.rel (%p643) target = $region72
      $region71: #{_lambda_.1} parent=5 // pred_region
        %s646 = ssub.s32 %s21, 2
        // Predicated region
        $region73: #{_lambda_.1} parent=71 // pred_check
          %p647 = pneg %p202
        $region74: #{_lambda_.1} parent=71 // pred_check_branch
          %649 = sbr.rel (%p647) target = $region76
        $region75: #{_lambda_.1} parent=71 // pred_region
          %s650 = sand.u32 %s187, 1
          %s651 = scalar_lea.sflag [#allocation4], %s650
          %s652 = sand.u32 %s187, 1
          %s653 = smul.addr %s652, 8
          %s654 = scalar_lea.vmem [#allocation10], %s653
          %655 = dma.done %s651, 128
        $region76: #{_lambda_.1} parent=71 // pred_fallthru
          _
      $region72: #{_lambda_.1} parent=5 // pred_fallthru
        _
    $region6: #{_lambda_.1} parent=1 // loop_footer
      %s25 = sadd.s32 1, %s21
    $region7: #{_lambda_.1} parent=1 // loop_footer_branch
      %20 = sbr.rel target = $region3
    $region8: #{_lambda_.1} parent=1 // loop_exit
      _
    %656 = vsyncpa [#allocation3], 1
    %s657 = scalar_lea.sflag [#allocation3], 1
    %658 = vsyncpa %s657, 1
    %659 = vsyncpa [#allocation6], 1
    %660 = vsyncpa [#allocation9], 1
    %661 = vsyncpa [#allocation4], 1
    %s662 = scalar_lea.sflag [#allocation4], 1
    %663 = vsyncpa %s662, 1

</llo_original>
